<compile_context>
chip_gen: v6e
topology: v6e:2x2x1
jax: 0.10.0
libtpu: 0.0.40
codegen_flags: <defaults>
</compile_context>

<pallas_src>
import jax
import jax.numpy as jnp
from jax import lax
from jax.experimental import pallas as pl
from jax.experimental.pallas import tpu as pltpu

_HALO = 3  # 'same' padding of the largest (7-tap) kernel


def _conv_layer_kernel(xp_ref, w_ref, b_ref, o_ref):
    # xp_ref: (Bb, L + 2*_HALO, C)  zero-padded input slab
    # w_ref : (7, C)                folded depthwise taps (k7 + k5 + k3 + identity)
    # b_ref : (1, C)                folded bias (b7 + b5 + b3)
    # o_ref : (Bb, L, C)
    L = o_ref.shape[1]
    xp = xp_ref[...].astype(jnp.float32)     # load the whole block once
    w = w_ref[...].astype(jnp.float32)       # hoisted: all taps read once
    b = b_ref[...].astype(jnp.float32)       # (1, C), broadcasts over (Bb, L, C)

    acc = xp[:, 0:L, :] * w[0, :] + b
    for t in range(1, 7):                    # unrolled 7-tap depthwise conv
        acc = acc + xp[:, t:t + L, :] * w[t, :]

    o_ref[...] = acc.astype(o_ref.dtype)


def _fold_params(w7, b7, w5, b5, w3, b3, dtype):
    """Fold the 3 depthwise convs + identity into a single 7-tap conv."""
    C = w7.shape[1]
    w_eff = jnp.zeros((7, C), dtype=jnp.float32)
    w_eff = w_eff.at[0:7, :].add(w7.astype(jnp.float32))   # k=7, offsets -3..+3
    w_eff = w_eff.at[1:6, :].add(w5.astype(jnp.float32))   # k=5, offsets -2..+2
    w_eff = w_eff.at[2:5, :].add(w3.astype(jnp.float32))   # k=3, offsets -1..+1
    w_eff = w_eff.at[3, :].add(1.0)                        # identity (residual) term
    b_eff = (b7.astype(jnp.float32) + b5.astype(jnp.float32)
             + b3.astype(jnp.float32)).reshape(1, C)
    return w_eff.astype(dtype), b_eff.astype(dtype)


def _pick_batch_block(B, L_pad, C_pad, bytes_per_elem, target_bytes=2 << 20):
    """Largest divisor of B whose input slab is <= ~2 MiB, keeping >= 2 grid steps."""
    per_batch = L_pad * C_pad * bytes_per_elem
    cap = max(1, target_bytes // per_batch)
    if B >= 2:
        cap = min(cap, max(1, B // 2))   # keep at least 2 parallel grid steps (megacore)
    bb = 1
    for d in range(1, B + 1):
        if B % d == 0 and d <= cap:
            bb = d
    return bb


@jax.jit
def conv_layer_forward(x, w7, b7, w5, b5, w3, b3):
    """x: (B, L, C).  w{k}: (k, C).  b{k}: (1, C).  Returns (B, L, C)."""
    B, L, C = x.shape
    dtype = x.dtype

    w_eff, b_eff = _fold_params(w7, b7, w5, b5, w3, b3, dtype)

    # Lane padding: round channels up to a multiple of 128 for lane-dense loads/stores.
    Cp = ((C + 127) // 128) * 128
    pad_c = Cp - C
    if pad_c:
        x = jnp.pad(x, ((0, 0), (0, 0), (0, pad_c)))
        w_eff = jnp.pad(w_eff, ((0, 0), (0, pad_c)))
        b_eff = jnp.pad(b_eff, ((0, 0), (0, pad_c)))

    # Sequence halo: zero-pad 3 rows on each side so every tap is a static slice
    # (exact zero-padded 'same' conv, no roll / mask needed in the kernel).
    xp = jnp.pad(x, ((0, 0), (_HALO, _HALO), (0, 0)))
    Lp = L + 2 * _HALO

    bb = _pick_batch_block(B, Lp, Cp, x.dtype.itemsize)
    grid = (B // bb,)

    out = pl.pallas_call(
        _conv_layer_kernel,
        out_shape=jax.ShapeDtypeStruct((B, L, Cp), dtype),
        grid_spec=pltpu.PrefetchScalarGridSpec(
            num_scalar_prefetch=0,
            grid=grid,
            in_specs=[
                pl.BlockSpec((bb, Lp, Cp), lambda i: (i, 0, 0)),
                pl.BlockSpec((7, Cp), lambda i: (0, 0)),
                pl.BlockSpec((1, Cp), lambda i: (0, 0)),
            ],
            out_specs=pl.BlockSpec((bb, L, Cp), lambda i: (i, 0, 0)),
        ),
        compiler_params=pltpu.CompilerParams(
            dimension_semantics=("parallel",),
            vmem_limit_bytes=32 * 1024 * 1024,
        ),
    )(xp, w_eff, b_eff)

    return out[:, :, :C] if pad_c else out


def _reference_forward(x, w7, b7, w5, b5, w3, b3):
    """Pure-JAX reference matching the PyTorch module exactly."""
    B, L, C = x.shape
    xt = jnp.transpose(x, (0, 2, 1))  # (B, C, L) == x.transpose(1, 2) in torch

    def dwconv(inp, w, b, k):
        # torch Conv1d(dim, dim, k, groups=dim) weight shape: (C, 1, k). Our w is (k, C).
        wt = jnp.transpose(w, (1, 0))[:, None, :]  # (C, 1, k)
        out = lax.conv_general_dilated(
            inp, wt, window_strides=(1,), padding=[(k // 2, k // 2)],
            dimension_numbers=("NCH", "OIH", "NCH"), feature_group_count=C)
        return out + b.reshape(1, C, 1)

    y = dwconv(xt, w7, b7, 7) + xt + dwconv(xt, w5, b5, 5) + dwconv(xt, w3, b3, 3)
    return jnp.transpose(y, (0, 2, 1))


if __name__ == "__main__":
    def _run_case(B, L, dim, seed):
        key = jax.random.PRNGKey(seed)
        kx, k7w, k7b, k5w, k5b, k3w, k3b = jax.random.split(key, 7)

        x = jax.random.normal(kx, (B, L, dim), dtype=jnp.float32)
        # Synthetic params with the same shapes as nn.Conv1d(dim, dim, k, groups=dim).
        w7 = jax.random.normal(k7w, (7, dim), dtype=jnp.float32) * 0.1
        b7 = jax.random.normal(k7b, (1, dim), dtype=jnp.float32) * 0.1
        w5 = jax.random.normal(k5w, (5, dim), dtype=jnp.float32) * 0.1
        b5 = jax.random.normal(k5b, (1, dim), dtype=jnp.float32) * 0.1
        w3 = jax.random.normal(k3w, (3, dim), dtype=jnp.float32) * 0.1
        b3 = jax.random.normal(k3b, (1, dim), dtype=jnp.float32) * 0.1

        out = jax.block_until_ready(conv_layer_forward(x, w7, b7, w5, b5, w3, b3))
        ref = _reference_forward(x, w7, b7, w5, b5, w3, b3)
        assert out.shape == (B, L, dim)
        assert jnp.allclose(out, ref, atol=1e-4, rtol=1e-4), (
            f"Pallas kernel mismatch vs reference (B={B}, L={L}, dim={dim})")

    _run_case(2, 16, 128, seed=0)   # lane-aligned channels
    _run_case(2, 20, 96, seed=1)    # non-128 channels / non-multiple-of-8 L (pad path)
    print("KERNEL_OK")
</pallas_src>

<mosaic_0001>
module attributes {stable_mosaic.version = 11 : i64} {
  func.func @_conv_layer_kernel(%arg0: i32, %arg1: memref<1x22x128xf32, #tpu.memory_space<vmem>>, %arg2: memref<7x128xf32, #tpu.memory_space<vmem>>, %arg3: memref<1x128xf32, #tpu.memory_space<vmem>>, %arg4: memref<1x16x128xf32, #tpu.memory_space<vmem>>) attributes {dimension_semantics = [#tpu.dimension_semantics<parallel>], iteration_bounds = array<i64: 2>, scalar_prefetch = 0 : i64, scratch_operands = 0 : i64, tpu.core_type = #tpu.core_type<tc>, window_params = [{transform_indices = @transform_0, window_bounds = array<i64: 1, 22, 128>}, {pipeline_mode = #tpu.pipeline_mode<synchronous>, transform_indices = @transform_1, window_bounds = array<i64: 7, 128>}, {pipeline_mode = #tpu.pipeline_mode<synchronous>, transform_indices = @transform_2, window_bounds = array<i64: 1, 128>}, {transform_indices = @transform_3, window_bounds = array<i64: 1, 16, 128>}]} {
    %c0 = arith.constant 0 : index
    %c0_0 = arith.constant 0 : index
    %c0_1 = arith.constant 0 : index
    %0 = vector.load %arg1[%c0, %c0_0, %c0_1] : memref<1x22x128xf32, #tpu.memory_space<vmem>>, vector<1x22x128xf32>
    %c0_2 = arith.constant 0 : index
    %c0_3 = arith.constant 0 : index
    %1 = vector.load %arg2[%c0_2, %c0_3] : memref<7x128xf32, #tpu.memory_space<vmem>>, vector<7x128xf32>
    %c0_4 = arith.constant 0 : index
    %c0_5 = arith.constant 0 : index
    %2 = vector.load %arg3[%c0_4, %c0_5] : memref<1x128xf32, #tpu.memory_space<vmem>>, vector<1x128xf32>
    %3 = vector.extract_strided_slice %0 {offsets = [0, 0, 0], sizes = [1, 16, 128], strides = [1, 1, 1]} : vector<1x22x128xf32> to vector<1x16x128xf32>
    %4 = vector.extract_strided_slice %1 {offsets = [0, 0], sizes = [1, 128], strides = [1, 1]} : vector<7x128xf32> to vector<1x128xf32>
    %5 = vector.shape_cast %4 : vector<1x128xf32> to vector<128xf32>
    %6 = vector.shape_cast %5 : vector<128xf32> to vector<1x1x128xf32>
    %7 = vector.broadcast %6 : vector<1x1x128xf32> to vector<1x16x128xf32>
    %8 = arith.mulf %3, %7 : vector<1x16x128xf32>
    %9 = vector.shape_cast %2 : vector<1x128xf32> to vector<1x1x128xf32>
    %10 = vector.broadcast %9 : vector<1x1x128xf32> to vector<1x16x128xf32>
    %11 = arith.addf %8, %10 : vector<1x16x128xf32>
    %12 = vector.extract_strided_slice %0 {offsets = [0, 1, 0], sizes = [1, 16, 128], strides = [1, 1, 1]} : vector<1x22x128xf32> to vector<1x16x128xf32>
    %13 = vector.extract_strided_slice %1 {offsets = [1, 0], sizes = [1, 128], strides = [1, 1]} : vector<7x128xf32> to vector<1x128xf32>
    %14 = vector.shape_cast %13 : vector<1x128xf32> to vector<128xf32>
    %15 = vector.shape_cast %14 : vector<128xf32> to vector<1x1x128xf32>
    %16 = vector.broadcast %15 : vector<1x1x128xf32> to vector<1x16x128xf32>
    %17 = arith.mulf %12, %16 : vector<1x16x128xf32>
    %18 = arith.addf %11, %17 : vector<1x16x128xf32>
    %19 = vector.extract_strided_slice %0 {offsets = [0, 2, 0], sizes = [1, 16, 128], strides = [1, 1, 1]} : vector<1x22x128xf32> to vector<1x16x128xf32>
    %20 = vector.extract_strided_slice %1 {offsets = [2, 0], sizes = [1, 128], strides = [1, 1]} : vector<7x128xf32> to vector<1x128xf32>
    %21 = vector.shape_cast %20 : vector<1x128xf32> to vector<128xf32>
    %22 = vector.shape_cast %21 : vector<128xf32> to vector<1x1x128xf32>
    %23 = vector.broadcast %22 : vector<1x1x128xf32> to vector<1x16x128xf32>
    %24 = arith.mulf %19, %23 : vector<1x16x128xf32>
    %25 = arith.addf %18, %24 : vector<1x16x128xf32>
    %26 = vector.extract_strided_slice %0 {offsets = [0, 3, 0], sizes = [1, 16, 128], strides = [1, 1, 1]} : vector<1x22x128xf32> to vector<1x16x128xf32>
    %27 = vector.extract_strided_slice %1 {offsets = [3, 0], sizes = [1, 128], strides = [1, 1]} : vector<7x128xf32> to vector<1x128xf32>
    %28 = vector.shape_cast %27 : vector<1x128xf32> to vector<128xf32>
    %29 = vector.shape_cast %28 : vector<128xf32> to vector<1x1x128xf32>
    %30 = vector.broadcast %29 : vector<1x1x128xf32> to vector<1x16x128xf32>
    %31 = arith.mulf %26, %30 : vector<1x16x128xf32>
    %32 = arith.addf %25, %31 : vector<1x16x128xf32>
    %33 = vector.extract_strided_slice %0 {offsets = [0, 4, 0], sizes = [1, 16, 128], strides = [1, 1, 1]} : vector<1x22x128xf32> to vector<1x16x128xf32>
    %34 = vector.extract_strided_slice %1 {offsets = [4, 0], sizes = [1, 128], strides = [1, 1]} : vector<7x128xf32> to vector<1x128xf32>
    %35 = vector.shape_cast %34 : vector<1x128xf32> to vector<128xf32>
    %36 = vector.shape_cast %35 : vector<128xf32> to vector<1x1x128xf32>
    %37 = vector.broadcast %36 : vector<1x1x128xf32> to vector<1x16x128xf32>
    %38 = arith.mulf %33, %37 : vector<1x16x128xf32>
    %39 = arith.addf %32, %38 : vector<1x16x128xf32>
    %40 = vector.extract_strided_slice %0 {offsets = [0, 5, 0], sizes = [1, 16, 128], strides = [1, 1, 1]} : vector<1x22x128xf32> to vector<1x16x128xf32>
    %41 = vector.extract_strided_slice %1 {offsets = [5, 0], sizes = [1, 128], strides = [1, 1]} : vector<7x128xf32> to vector<1x128xf32>
    %42 = vector.shape_cast %41 : vector<1x128xf32> to vector<128xf32>
    %43 = vector.shape_cast %42 : vector<128xf32> to vector<1x1x128xf32>
    %44 = vector.broadcast %43 : vector<1x1x128xf32> to vector<1x16x128xf32>
    %45 = arith.mulf %40, %44 : vector<1x16x128xf32>
    %46 = arith.addf %39, %45 : vector<1x16x128xf32>
    %47 = vector.extract_strided_slice %0 {offsets = [0, 6, 0], sizes = [1, 16, 128], strides = [1, 1, 1]} : vector<1x22x128xf32> to vector<1x16x128xf32>
    %48 = vector.extract_strided_slice %1 {offsets = [6, 0], sizes = [1, 128], strides = [1, 1]} : vector<7x128xf32> to vector<1x128xf32>
    %49 = vector.shape_cast %48 : vector<1x128xf32> to vector<128xf32>
    %50 = vector.shape_cast %49 : vector<128xf32> to vector<1x1x128xf32>
    %51 = vector.broadcast %50 : vector<1x1x128xf32> to vector<1x16x128xf32>
    %52 = arith.mulf %47, %51 : vector<1x16x128xf32>
    %53 = arith.addf %46, %52 : vector<1x16x128xf32>
    %c0_6 = arith.constant 0 : index
    %c0_7 = arith.constant 0 : index
    %c0_8 = arith.constant 0 : index
    %54 = vector.load %arg4[%c0_6, %c0_7, %c0_8] : memref<1x16x128xf32, #tpu.memory_space<vmem>>, vector<1x16x128xf32>
    tpu.vector_store %arg4[%c0_6, %c0_7, %c0_8], %53 {strides = array<i32>} : memref<1x16x128xf32, #tpu.memory_space<vmem>>, vector<1x16x128xf32>,
    return
  }
  func.func @transform_0(%arg0: i32) -> (i32, i32, i32) {
    %c0_i32 = arith.constant 0 : i32
    %c0_i32_0 = arith.constant 0 : i32
    %c0_i32_1 = arith.constant 0 : i32
    return %arg0, %c0_i32, %c0_i32_0 : i32, i32, i32
  }
  func.func @transform_1(%arg0: i32) -> (i32, i32) {
    %c0_i32 = arith.constant 0 : i32
    %c0_i32_0 = arith.constant 0 : i32
    %c0_i32_1 = arith.constant 0 : i32
    return %c0_i32, %c0_i32_0 : i32, i32
  }
  func.func @transform_2(%arg0: i32) -> (i32, i32) {
    %c0_i32 = arith.constant 0 : i32
    %c0_i32_0 = arith.constant 0 : i32
    %c0_i32_1 = arith.constant 0 : i32
    return %c0_i32, %c0_i32_0 : i32, i32
  }
  func.func @transform_3(%arg0: i32) -> (i32, i32, i32) {
    %c0_i32 = arith.constant 0 : i32
    %c0_i32_0 = arith.constant 0 : i32
    %c0_i32_1 = arith.constant 0 : i32
    return %arg0, %c0_i32, %c0_i32_0 : i32, i32, i32
  }
}

</mosaic_0001>

<llo_original>
// kernel: conv_layer_forward.1
$region0: #{conv_layer_forward.1}
  #allocation0 [shape = 'u32[]', space=smem, size = 0x4, offset = 0x4, fixed_abs, tag = 'smem constant byte address 0x4 - core index']
  #allocation1 [shape = 'u32[144,128]{1,0:T(1,128)}', space=vmem, size = 0x12000, scoped, tag = 'internal scratch']
  %s0 = inlined_call_operand.vmem [shape: f32[2,22,128], index: 0, kind: input, shape index: {}]
  %s1 = inlined_call_operand.vmem [shape: f32[7,128], index: 1, kind: input, shape index: {}]
  %s2 = inlined_call_operand.vmem [shape: f32[1,128], index: 2, kind: input, shape index: {}]
  %s3 = inlined_call_operand.hbm [shape: f32[2,16,128], index: 3, kind: output, shape index: {}]
  %s4 = sld [smem:[#allocation0]]
  $region45: #{conv_layer_forward.1} parent=0
    _
  %s6 = ssub.s32 1, %s4
  %s7 = scalar_select 0, %s6, %s4
  $region1: #{conv_layer_forward.1} parent=0
    #allocation2 [shape = 'u8[16384]{0}', space=vmem, size = 0x4000, scoped, tag = 'output window, operand 0']
    #allocation3 [shape = 's32[2]{0}', space=sflag, size = 0x8, scoped, tag = 'scoped memory for conv_layer_forward.1']
    %8 = vsyncpa [#allocation3], 0
    %s9 = scalar_lea.sflag [#allocation3], 1
    %10 = vsyncpa %s9, 0
    loop: start=0, step=1, limit=4
    $region2: #{conv_layer_forward.1} parent=1 // loop_pre_header
      _
    $region3: #{conv_layer_forward.1} parent=1 // loop_header
      %s12 = sphi 0, %s16
      %p13 = scmp.ge.s32.totalorder %s12, 4
      %s22 = sphi 0, %s24
      %s25 = sphi 0, %s22
      %s26 = sphi 0, %s25
      %s42 = sphi 0, %s26
      %s46 = sphi 0, %s46
      %s48 = sphi 0, %s46
      %s49 = sphi 0, %s48
      %s63 = sphi 0, %s49
      %s67 = sphi 0, %s67
      %s69 = sphi 0, %s67
      %s70 = sphi 0, %s69
      %s84 = sphi 0, %s70
      %s90 = sphi 0, %s92
      %s93 = sphi 0, %s90
      %s94 = sphi 0, %s93
      %s110 = sphi 0, %s94
    $region4: #{conv_layer_forward.1} parent=1 // loop_header_branch
      %15 = sbr.rel (%p13) target = $region8
    $region5: #{conv_layer_forward.1} parent=1 // loop_body
      %s17 = ssub.s32 %s12, 1
      %s18 = ssub.s32 %s12, 2
      %s19 = sadd.s32 %s12, 1
      %s20 = ssub.s32 %s12, %s19
      %p21 = scmp.eq.s32.totalorder %s20, 0
      %s23 = sadd.s32 %s22, 1
      %s24 = scalar_select %p21, %s22, %s23
      %p27 = pneg %p21
      %p28 = scmp.eq.s32.totalorder %s12, 1
      %p29 = por %p27, %p28
      %p30 = scmp.ne.s32.totalorder %s22, %s25
      %p31 = scmp.eq.s32.totalorder %s12, 0
      %p32 = por %p30, %p31
      %p33 = scmp.ne.s32.totalorder %s22, %s25
      %p34 = scmp.eq.s32.totalorder %s17, 1
      %p35 = por %p33, %p34
      %p36 = scmp.ne.s32.totalorder %s25, %s26
      %p37 = scmp.eq.s32.totalorder %s17, 0
      %p38 = por %p36, %p37
      %p39 = scmp.ne.s32.totalorder %s25, %s26
      %p40 = scmp.eq.s32.totalorder %s18, 1
      %p41 = por %p39, %p40
      %p43 = scmp.ne.s32.totalorder %s26, %s42
      %p44 = scmp.eq.s32.totalorder %s18, 0
      %p45 = por %p43, %p44
      %s47 = sadd.s32 %s46, 1
      %p50 = scmp.eq.s32.totalorder %s12, 1
      %p51 = scmp.ne.s32.totalorder %s46, %s48
      %p52 = scmp.eq.s32.totalorder %s12, 0
      %p53 = por %p51, %p52
      %p54 = scmp.ne.s32.totalorder %s46, %s48
      %p55 = scmp.eq.s32.totalorder %s17, 1
      %p56 = por %p54, %p55
      %p57 = scmp.ne.s32.totalorder %s48, %s49
      %p58 = scmp.eq.s32.totalorder %s17, 0
      %p59 = por %p57, %p58
      %p60 = scmp.ne.s32.totalorder %s48, %s49
      %p61 = scmp.eq.s32.totalorder %s18, 1
      %p62 = por %p60, %p61
      %p64 = scmp.ne.s32.totalorder %s49, %s63
      %p65 = scmp.eq.s32.totalorder %s18, 0
      %p66 = por %p64, %p65
      %s68 = sadd.s32 %s67, 1
      %p71 = scmp.eq.s32.totalorder %s12, 1
      %p72 = scmp.ne.s32.totalorder %s67, %s69
      %p73 = scmp.eq.s32.totalorder %s12, 0
      %p74 = por %p72, %p73
      %p75 = scmp.ne.s32.totalorder %s67, %s69
      %p76 = scmp.eq.s32.totalorder %s17, 1
      %p77 = por %p75, %p76
      %p78 = scmp.ne.s32.totalorder %s69, %s70
      %p79 = scmp.eq.s32.totalorder %s17, 0
      %p80 = por %p78, %p79
      %p81 = scmp.ne.s32.totalorder %s69, %s70
      %p82 = scmp.eq.s32.totalorder %s18, 1
      %p83 = por %p81, %p82
      %p85 = scmp.ne.s32.totalorder %s70, %s84
      %p86 = scmp.eq.s32.totalorder %s18, 0
      %p87 = por %p85, %p86
      %s88 = ssub.s32 %s12, %s19
      %p89 = scmp.eq.s32.totalorder %s88, 0
      %s91 = sadd.s32 %s90, 1
      %s92 = scalar_select %p89, %s90, %s91
      %p95 = pneg %p89
      %p96 = scmp.eq.s32.totalorder %s12, 1
      %p97 = por %p95, %p96
      %p98 = scmp.ne.s32.totalorder %s90, %s93
      %p99 = scmp.eq.s32.totalorder %s12, 0
      %p100 = por %p98, %p99
      %p101 = scmp.ne.s32.totalorder %s90, %s93
      %p102 = scmp.eq.s32.totalorder %s17, 1
      %p103 = por %p101, %p102
      %p104 = scmp.ne.s32.totalorder %s93, %s94
      %p105 = scmp.eq.s32.totalorder %s17, 0
      %p106 = por %p104, %p105
      %p107 = scmp.ne.s32.totalorder %s93, %s94
      %p108 = scmp.eq.s32.totalorder %s18, 1
      %p109 = por %p107, %p108
      %p111 = scmp.ne.s32.totalorder %s94, %s110
      %p112 = scmp.eq.s32.totalorder %s18, 0
      %p113 = por %p111, %p112
      %p114 = scmp.le.s32.totalorder 1, %s12
      %p115 = scmp.lt.s32.totalorder %s12, 3
      %p116 = pnand %p114, %p115
      %p117 = pneg %p116
      // Predicated region
      $region9: #{conv_layer_forward.1} parent=5 // pred_check
        _
      $region10: #{conv_layer_forward.1} parent=5 // pred_check_branch
        %119 = sbr.rel (%p116) target = $region12
      $region11: #{conv_layer_forward.1} parent=5 // pred_region
        %s120 = ssub.s32 %s12, 1
        // Predicated region
        $region13: #{conv_layer_forward.1} parent=11 // pred_check
          %p121 = pneg %p59
        $region14: #{conv_layer_forward.1} parent=11 // pred_check_branch
          %123 = sbr.rel (%p121) target = $region16
        $region15: #{conv_layer_forward.1} parent=11 // pred_region
          _
        $region16: #{conv_layer_forward.1} parent=11 // pred_fallthru
          _
        // Predicated region
        $region17: #{conv_layer_forward.1} parent=11 // pred_check
          %p124 = pneg %p80
        $region18: #{conv_layer_forward.1} parent=11 // pred_check_branch
          %126 = sbr.rel (%p124) target = $region20
        $region19: #{conv_layer_forward.1} parent=11 // pred_region
          _
        $region20: #{conv_layer_forward.1} parent=11 // pred_fallthru
          _
      $region12: #{conv_layer_forward.1} parent=5 // pred_fallthru
        _
      %p127 = scmp.lt.s32.totalorder %s12, 2
      // Predicated region
      $region21: #{conv_layer_forward.1} parent=5 // pred_check
        %p128 = pneg %p127
      $region22: #{conv_layer_forward.1} parent=5 // pred_check_branch
        %130 = sbr.rel (%p128) target = $region24
      $region23: #{conv_layer_forward.1} parent=5 // pred_region
        // Predicated region
        $region25: #{conv_layer_forward.1} parent=23 // pred_check
          %p131 = pneg %p32
        $region26: #{conv_layer_forward.1} parent=23 // pred_check_branch
          %133 = sbr.rel (%p131) target = $region28
        $region27: #{conv_layer_forward.1} parent=23 // pred_region
          %p134 = scmp.lt.s32.totalorder %s12, 1
          %s135 = scalar_select %p134, %s12, 1
          %s136 = smul.addr %s135, 3
          %s137 = smul.addr %s136, 8
          %s138 = scalar_lea.vmem %s0, %s137
        $region28: #{conv_layer_forward.1} parent=23 // pred_fallthru
          _
      $region24: #{conv_layer_forward.1} parent=5 // pred_fallthru
        _
      %p139 = scmp.le.s32.totalorder 1, %s12
      %p140 = scmp.lt.s32.totalorder %s12, 3
      %p141 = pnand %p139, %p140
      %p142 = pneg %p141
      // Predicated region
      $region29: #{conv_layer_forward.1} parent=5 // pred_check
        _
      $region30: #{conv_layer_forward.1} parent=5 // pred_check_branch
        %144 = sbr.rel (%p141) target = $region32
      $region31: #{conv_layer_forward.1} parent=5 // pred_region
        %s145 = ssub.s32 %s12, 1
        %p146 = scmp.lt.s32.totalorder %s17, 1
        %s147 = scalar_select %p146, %s17, 1
        %s148 = smul.addr %s147, 3
        %s149 = smul.addr %s148, 8
        %s150 = scalar_lea.vmem %s0, %s149
        %p151 = pneg %p38
        %p152 = pneg %p35
        %p153 = pneg %p59
        %p154 = pneg %p56
        %p155 = pneg %p80
        %p156 = pneg %p77
        %p157 = pneg %p106
        %p158 = pneg %p103
        %s159 = sand.u32 %s93, 1
        %s160 = scalar_lea.sflag [#allocation3], %s159
        %s161 = sand.u32 %s93, 1
        %s162 = smul.addr %s161, 16
        %s163 = scalar_lea.vmem [#allocation2], %s162
        %p164 = scmp.lt.s32.totalorder %s17, 1
        %s165 = scalar_select %p164, %s17, 1
        %s166 = smul.addr %s165, 3
        %s167 = smul.addr %s166, 8
        %s168 = scalar_lea.vmem %s0, %s167
        %v169 = vld [vmem:[%s168] sm:$0xff]
        %v170 = vld [vmem:[%s168 + $0x8] sm:$0xff]
        %v171 = vld [vmem:[%s168 + $0x10] sm:$0x3f]
        %v172 = vld [vmem:[%s1] sm:$0x7f]
        %v173 = vld [vmem:[%s2] sm:$0x1]
        %v174 = vlaneseq
        %v175 = vshrl.u32 %v174, 7
        %v176 = vsub.s32 0, %v175
        %v177 = vrot.slane %v172, %v176
        %v178 = vmul.f32 %v169, %v177
        %v179 = vmul.f32 %v170, %v177
        %v181 = vlaneseq
        %v182 = vshrl.u32 %v181, 7
        %v183 = vsub.s32 0, %v182
        %v184 = vrot.slane %v173, %v183
        %v186 = vadd.f32 %v178, %v184
        %v187 = vadd.f32 %v179, %v184
        %v188 = vlaneseq
        %v189 = vshrl.u32 %v188, 7
        %v190 = vsub.s32 1, %v189
        %v191 = vrot.slane %v172, %v190
        %v192 = vmul.f32 %v169, %v191
        %v193 = vmul.f32 %v170, %v191
        %v194 = vmul.f32 %v171, %v191
        %vm198 = vcmask 1046528
        %v199 = vrot.slane %v192, 1
        %v200 = vrot.slane %v193, 1
        %v201 = vsel %vm198, %v199, %v200
        %v202 = vrot.slane %v194, 1
        %v203 = vsel %vm198, %v200, %v202
        %v206 = vadd.f32 %v186, %v201
        %v207 = vadd.f32 %v187, %v203
        %v208 = vlaneseq
        %v209 = vshrl.u32 %v208, 7
        %v210 = vsub.s32 2, %v209
        %v211 = vrot.slane %v172, %v210
        %v212 = vmul.f32 %v169, %v211
        %v213 = vmul.f32 %v170, %v211
        %v214 = vmul.f32 %v171, %v211
        %vm218 = vcmask 1045504
        %v219 = vrot.slane %v212, 2
        %v220 = vrot.slane %v213, 2
        %v221 = vsel %vm218, %v219, %v220
        %v222 = vrot.slane %v214, 2
        %v223 = vsel %vm218, %v220, %v222
        %v226 = vadd.f32 %v206, %v221
        %v227 = vadd.f32 %v207, %v223
        %v228 = vlaneseq
        %v229 = vshrl.u32 %v228, 7
        %v230 = vsub.s32 3, %v229
        %v231 = vrot.slane %v172, %v230
        %v232 = vmul.f32 %v169, %v231
        %v233 = vmul.f32 %v170, %v231
        %v234 = vmul.f32 %v171, %v231
        %vm238 = vcmask 1044480
        %v239 = vrot.slane %v232, 3
        %v240 = vrot.slane %v233, 3
        %v241 = vsel %vm238, %v239, %v240
        %v242 = vrot.slane %v234, 3
        %v243 = vsel %vm238, %v240, %v242
        %v246 = vadd.f32 %v226, %v241
        %v247 = vadd.f32 %v227, %v243
        %v248 = vlaneseq
        %v249 = vshrl.u32 %v248, 7
        %v250 = vsub.s32 4, %v249
        %v251 = vrot.slane %v172, %v250
        %v252 = vmul.f32 %v169, %v251
        %v253 = vmul.f32 %v170, %v251
        %v254 = vmul.f32 %v171, %v251
        %vm258 = vcmask 1043456
        %v259 = vrot.slane %v252, 4
        %v260 = vrot.slane %v253, 4
        %v261 = vsel %vm258, %v259, %v260
        %v262 = vrot.slane %v254, 4
        %v263 = vsel %vm258, %v260, %v262
        %v266 = vadd.f32 %v246, %v261
        %v267 = vadd.f32 %v247, %v263
        %v268 = vlaneseq
        %v269 = vshrl.u32 %v268, 7
        %v270 = vsub.s32 5, %v269
        %v271 = vrot.slane %v172, %v270
        %v272 = vmul.f32 %v169, %v271
        %v273 = vmul.f32 %v170, %v271
        %v274 = vmul.f32 %v171, %v271
        %vm278 = vcmask 1042432
        %v279 = vrot.slane %v272, 5
        %v280 = vrot.slane %v273, 5
        %v281 = vsel %vm278, %v279, %v280
        %v282 = vrot.slane %v274, 5
        %v283 = vsel %vm278, %v280, %v282
        %v286 = vadd.f32 %v266, %v281
        %v287 = vadd.f32 %v267, %v283
        %v288 = vlaneseq
        %v289 = vshrl.u32 %v288, 7
        %v290 = vsub.s32 6, %v289
        %v291 = vrot.slane %v172, %v290
        %v292 = vmul.f32 %v169, %v291
        %v293 = vmul.f32 %v170, %v291
        %v294 = vmul.f32 %v171, %v291
        %vm298 = vcmask 1041408
        %v299 = vrot.slane %v292, 6
        %v300 = vrot.slane %v293, 6
        %v301 = vsel %vm298, %v299, %v300
        %v302 = vrot.slane %v294, 6
        %v303 = vsel %vm298, %v300, %v302
        %v306 = vadd.f32 %v286, %v301
        %v307 = vadd.f32 %v287, %v303
        %308 = vst [vmem:[%s163] sm:$0xff] %v306
        %309 = vst [vmem:[%s163 + $0x8] sm:$0xff] %v307
        %s310 = sand.u32 %s93, 1
        %s311 = scalar_lea.sflag [#allocation3], %s310
        %s312 = sand.u32 %s93, 1
        %s313 = smul.addr %s312, 16
        %s314 = scalar_lea.vmem [#allocation2], %s313
        // Predicated region
        $region33: #{conv_layer_forward.1} parent=31 // pred_check
          %p315 = pneg %p103
        $region34: #{conv_layer_forward.1} parent=31 // pred_check_branch
          %317 = sbr.rel (%p315) target = $region36
        $region35: #{conv_layer_forward.1} parent=31 // pred_region
          %s319 = ssub.s32 256, 256
          %320 = vsyncadd %s311, %s319
          %s321 = smul.addr %s17, 2
          %s322 = smul.addr %s321, 128
          %s323 = scalar_lea.hbm %s3, %s322
          %s324 = sshll.u32 %s314, 4
          %s325 = int_to_ptr.vmem [resolvable:$true] %s324
          %330 = dma.vmem_to_hbm [thread:$0]  %s325, 256, %s323, %s311, 128, 128, 8
        $region36: #{conv_layer_forward.1} parent=31 // pred_fallthru
          _
      $region32: #{conv_layer_forward.1} parent=5 // pred_fallthru
        _
      %p331 = scmp.le.s32.totalorder 2, %s12
      // Predicated region
      $region37: #{conv_layer_forward.1} parent=5 // pred_check
        %p332 = pneg %p331
      $region38: #{conv_layer_forward.1} parent=5 // pred_check_branch
        %334 = sbr.rel (%p332) target = $region40
      $region39: #{conv_layer_forward.1} parent=5 // pred_region
        %s335 = ssub.s32 %s12, 2
        // Predicated region
        $region41: #{conv_layer_forward.1} parent=39 // pred_check
          %p336 = pneg %p109
        $region42: #{conv_layer_forward.1} parent=39 // pred_check_branch
          %338 = sbr.rel (%p336) target = $region44
        $region43: #{conv_layer_forward.1} parent=39 // pred_region
          %s339 = sand.u32 %s94, 1
          %s340 = scalar_lea.sflag [#allocation3], %s339
          %s341 = sand.u32 %s94, 1
          %s342 = smul.addr %s341, 16
          %s343 = scalar_lea.vmem [#allocation2], %s342
          %344 = dma.done %s340, 256
        $region44: #{conv_layer_forward.1} parent=39 // pred_fallthru
          _
      $region40: #{conv_layer_forward.1} parent=5 // pred_fallthru
        _
    $region6: #{conv_layer_forward.1} parent=1 // loop_footer
      %s16 = sadd.s32 1, %s12
    $region7: #{conv_layer_forward.1} parent=1 // loop_footer_branch
      %11 = sbr.rel target = $region3
    $region8: #{conv_layer_forward.1} parent=1 // loop_exit
      _
    %345 = vsyncpa [#allocation3], 1
    %s346 = scalar_lea.sflag [#allocation3], 1
    %347 = vsyncpa %s346, 1

</llo_original>
